<compile_context>
chip_gen: v6e
topology: v6e:2x2x1
jax: 0.10.0
libtpu: 0.0.40
codegen_flags: <defaults>
</compile_context>

<pallas_src>
import math

import jax
import jax.numpy as jnp
from jax import lax
from jax.experimental import pallas as pl
from jax.experimental.pallas import tpu as pltpu

_SQRT_HALF = 0.7071067811865476  # 1/sqrt(2)


def _gelu_exact(x):
    # nn.GELU() default is the exact (erf-based) GELU.
    return 0.5 * x * (1.0 + lax.erf(x * jnp.asarray(_SQRT_HALF, x.dtype)))


def _round_up(a, b):
    return (a + b - 1) // b * b


def vit_mlp_kernel(x_ref, w1_ref, b1_ref, w2_ref, b2_ref, o_ref, acc_ref):
    # x_ref:  (tm, Dp)   bf16 row tile
    # w1_ref: (Dp, th)   bf16 dense1 weight slab (in, out)
    # b1_ref: (1, th)    f32  dense1 bias slab
    # w2_ref: (th, Dp)   bf16 dense2 weight slab (in, out)
    # b2_ref: (1, Dp)    f32  dense2 bias
    # o_ref:  (tm, Dp)   output row tile
    # acc_ref:(tm, Dp)   f32 accumulator over the hidden (reduction) axis
    j = pl.program_id(1)

    @pl.when(j == 0)
    def _():
        acc_ref[...] = jnp.zeros_like(acc_ref)

    # dense1 slab on the MXU (f32 accumulate), f32 bias + exact GELU.
    h = jnp.dot(x_ref[...], w1_ref[...],
                preferred_element_type=jnp.float32) + b1_ref[...]
    h = _gelu_exact(h)
    # dropout1: identity (eval mode)

    # dense2 partial product for this hidden slab, accumulated in f32.
    acc_ref[...] += jnp.dot(h.astype(jnp.bfloat16), w2_ref[...],
                            preferred_element_type=jnp.float32)

    @pl.when(j == pl.num_programs(1) - 1)
    def _():
        # dropout2: identity (eval mode)
        o_ref[...] = (acc_ref[...] + b2_ref[...]).astype(o_ref.dtype)


def vit_mlp(x, w1, b1, w2, b2, *, tm=256, th=1024):
    """x: (batch, seq, D); w1: (D, H); b1: (H,); w2: (H, D); b2: (D,)."""
    batch, seq, d_out = x.shape
    d_in1, hidden = w1.shape
    assert d_in1 == d_out and w2.shape == (hidden, d_out)
    assert b1.shape == (hidden,) and b2.shape == (d_out,)
    out_dtype = x.dtype

    n = batch * seq

    # Row tile: large (MXU friendly), multiple of 8 (sublane), never larger
    # than the padded row count.
    tm_eff = min(tm, _round_up(n, 8))
    n_pad = _round_up(n, tm_eff)

    # Token dim padded to a lane-dense multiple of 128 (no-op for real ViT
    # dims); zero-padding keeps the math exact.
    d_pad = _round_up(d_out, 128)

    # Hidden tile: streaming / reduction axis for W1, W2.
    if hidden <= th:
        th_eff = hidden
        hidden_pad = hidden
    else:
        th_eff = max(128, (th // 128) * 128)   # multiple of 128 for clean tiling
        hidden_pad = _round_up(hidden, th_eff)

    # bf16 operands for the MXU; biases stay f32 (added post f32-accumulate).
    x2 = x.reshape(n, d_out).astype(jnp.bfloat16)
    x2 = jnp.pad(x2, ((0, n_pad - n), (0, d_pad - d_out)))
    w1_bf = jnp.pad(w1.astype(jnp.bfloat16),
                    ((0, d_pad - d_out), (0, hidden_pad - hidden)))
    w2_bf = jnp.pad(w2.astype(jnp.bfloat16),
                    ((0, hidden_pad - hidden), (0, d_pad - d_out)))
    b1_f = jnp.pad(b1.astype(jnp.float32).reshape(1, hidden),
                   ((0, 0), (0, hidden_pad - hidden)))
    b2_f = jnp.pad(b2.astype(jnp.float32).reshape(1, d_out),
                   ((0, 0), (0, d_pad - d_out)))

    grid = (n_pad // tm_eff, hidden_pad // th_eff)

    # VMEM budget (double-buffered inputs/outputs + f32 accumulator) + headroom.
    out_bytes = jnp.dtype(out_dtype).itemsize
    est_vmem = 2 * (tm_eff * d_pad * 2           # x tile (bf16)
                    + d_pad * th_eff * 2         # w1 slab (bf16)
                    + th_eff * d_pad * 2         # w2 slab (bf16)
                    + th_eff * 4 + d_pad * 4     # bias slabs (f32)
                    + tm_eff * d_pad * out_bytes)  # out tile
    est_vmem += tm_eff * d_pad * 4               # accumulator scratch
    vmem_limit = int(min(64 * 1024 * 1024, max(32 * 1024 * 1024, 2 * est_vmem)))

    cost = pl.CostEstimate(
        flops=4 * n * d_out * hidden,                 # two matmuls
        transcendentals=n * hidden,                   # erf per hidden element
        bytes_accessed=(n * d_out * 2                 # x (bf16)
                        + d_out * hidden * 2          # w1 (bf16)
                        + hidden * d_out * 2          # w2 (bf16)
                        + hidden * 4 + d_out * 4      # biases (f32)
                        + n * d_out * out_bytes),     # output
    )

    out2 = pl.pallas_call(
        vit_mlp_kernel,
        out_shape=jax.ShapeDtypeStruct((n_pad, d_pad), out_dtype),
        grid_spec=pltpu.PrefetchScalarGridSpec(
            num_scalar_prefetch=0,
            grid=grid,
            in_specs=[
                pl.BlockSpec((tm_eff, d_pad), lambda i, j: (i, 0)),   # x rows
                pl.BlockSpec((d_pad, th_eff), lambda i, j: (0, j)),   # w1 slab
                pl.BlockSpec((1, th_eff), lambda i, j: (0, j)),       # b1 slab
                pl.BlockSpec((th_eff, d_pad), lambda i, j: (j, 0)),   # w2 slab
                pl.BlockSpec((1, d_pad), lambda i, j: (0, 0)),        # b2
            ],
            out_specs=pl.BlockSpec((tm_eff, d_pad), lambda i, j: (i, 0)),
            scratch_shapes=[pltpu.VMEM((tm_eff, d_pad), jnp.float32)],
        ),
        compiler_params=pltpu.CompilerParams(
            dimension_semantics=("parallel", "arbitrary"),
            vmem_limit_bytes=vmem_limit,
        ),
        cost_estimate=cost,
    )(x2, w1_bf, b1_f, w2_bf, b2_f)

    return out2[:n, :d_out].reshape(batch, seq, d_out)


def init_params(key, mlp_num_hiddens, mlp_num_outputs, dtype=jnp.float32):
    """Deterministic init mimicking nn.Linear's U(-1/sqrt(fan_in), 1/sqrt(fan_in))."""
    k1, k2, k3, k4 = jax.random.split(key, 4)
    bound1 = 1.0 / math.sqrt(mlp_num_outputs)
    bound2 = 1.0 / math.sqrt(mlp_num_hiddens)
    # Stored as (in, out) so the kernel does x @ W + b.
    w1 = jax.random.uniform(k1, (mlp_num_outputs, mlp_num_hiddens),
                            dtype, -bound1, bound1)
    b1 = jax.random.uniform(k2, (mlp_num_hiddens,), dtype, -bound1, bound1)
    w2 = jax.random.uniform(k3, (mlp_num_hiddens, mlp_num_outputs),
                            dtype, -bound2, bound2)
    b2 = jax.random.uniform(k4, (mlp_num_outputs,), dtype, -bound2, bound2)
    return w1, b1, w2, b2


def vit_mlp_ref(x, w1, b1, w2, b2):
    """Reference mirroring the kernel's precision (bf16 operands, f32 accum)."""
    xb = x.astype(jnp.bfloat16).astype(jnp.float32)
    w1b = w1.astype(jnp.bfloat16).astype(jnp.float32)
    w2b = w2.astype(jnp.bfloat16).astype(jnp.float32)
    h = _gelu_exact(xb @ w1b + b1.astype(jnp.float32))
    hb = h.astype(jnp.bfloat16).astype(jnp.float32)
    return (hb @ w2b + b2.astype(jnp.float32)).astype(x.dtype)


if __name__ == "__main__":
    key = jax.random.PRNGKey(0)
    kx, kp = jax.random.split(key)

    batch, seq = 2, 8
    mlp_num_outputs = 32   # ViT token dim
    mlp_num_hiddens = 64   # MLP hidden dim

    x = jax.random.normal(kx, (batch, seq, mlp_num_outputs), jnp.float32)
    w1, b1, w2, b2 = init_params(kp, mlp_num_hiddens, mlp_num_outputs)

    out = vit_mlp(x, w1, b1, w2, b2)
    out = jax.block_until_ready(out)

    ref = vit_mlp_ref(x, w1, b1, w2, b2)
    assert out.shape == (batch, seq, mlp_num_outputs)
    assert jnp.allclose(out, ref, atol=1e-4, rtol=1e-4), "mismatch vs reference"

    print("KERNEL_OK")
</pallas_src>

<mosaic_0001>
module attributes {stable_mosaic.version = 11 : i64} {
  func.func @vit_mlp_kernel(%arg0: i32, %arg1: i32, %arg2: memref<16x128xbf16, #tpu.memory_space<vmem>>, %arg3: memref<128x64xbf16, #tpu.memory_space<vmem>>, %arg4: memref<1x64xf32, #tpu.memory_space<vmem>>, %arg5: memref<64x128xbf16, #tpu.memory_space<vmem>>, %arg6: memref<1x128xf32, #tpu.memory_space<vmem>>, %arg7: memref<16x128xf32, #tpu.memory_space<vmem>>, %arg8: memref<16x128xf32, #tpu.memory_space<vmem>>) attributes {dimension_semantics = [#tpu.dimension_semantics<parallel>, #tpu.dimension_semantics<arbitrary>], iteration_bounds = array<i64: 1, 1>, scalar_prefetch = 0 : i64, scratch_operands = 1 : i64, tpu.core_type = #tpu.core_type<tc>, window_params = [{transform_indices = @transform_0, window_bounds = array<i64: 16, 128>}, {transform_indices = @transform_1, window_bounds = array<i64: 128, 64>}, {transform_indices = @transform_2, window_bounds = array<i64: 1, 64>}, {transform_indices = @transform_3, window_bounds = array<i64: 64, 128>}, {pipeline_mode = #tpu.pipeline_mode<synchronous>, transform_indices = @transform_4, window_bounds = array<i64: 1, 128>}, {transform_indices = @transform_5, window_bounds = array<i64: 16, 128>}]} {
    %c0_i32 = arith.constant 0 : i32
    %0 = arith.cmpi eq, %arg1, %c0_i32 : i32
    %1 = arith.extui %0 : i1 to i32
    %c0_i32_0 = arith.constant 0 : i32
    %2 = arith.cmpi ne, %1, %c0_i32_0 : i32
    scf.if %2 {
      %cst_18 = arith.constant 0.000000e+00 : f32
      %26 = vector.broadcast %cst_18 : f32 to vector<16x128xf32>
      %c0_19 = arith.constant 0 : index
      %c0_20 = arith.constant 0 : index
      %27 = vector.load %arg8[%c0_19, %c0_20] : memref<16x128xf32, #tpu.memory_space<vmem>>, vector<16x128xf32>
      tpu.vector_store %arg8[%c0_19, %c0_20], %26 {strides = array<i32>} : memref<16x128xf32, #tpu.memory_space<vmem>>, vector<16x128xf32>,
    } else {
    }
    %c0 = arith.constant 0 : index
    %c0_1 = arith.constant 0 : index
    %3 = vector.load %arg2[%c0, %c0_1] : memref<16x128xbf16, #tpu.memory_space<vmem>>, vector<16x128xbf16>
    %c0_2 = arith.constant 0 : index
    %c0_3 = arith.constant 0 : index
    %4 = vector.load %arg3[%c0_2, %c0_3] : memref<128x64xbf16, #tpu.memory_space<vmem>>, vector<128x64xbf16>
    %cst = arith.constant dense<0.000000e+00> : vector<16x64xf32>
    %5 = tpu.matmul %3, %4, %cst {dimension_numbers = #tpu.dot_dimension_numbers<[1], [0], [0], [1], [0, 0, 1, 1], [], []>} : vector<16x128xbf16>, vector<128x64xbf16>, vector<16x64xf32> -> vector<16x64xf32>
    %c0_4 = arith.constant 0 : index
    %c0_5 = arith.constant 0 : index
    %6 = vector.load %arg4[%c0_4, %c0_5] : memref<1x64xf32, #tpu.memory_space<vmem>>, vector<1x64xf32>
    %7 = vector.broadcast %6 : vector<1x64xf32> to vector<16x64xf32>
    %8 = arith.addf %5, %7 : vector<16x64xf32>
    %cst_6 = arith.constant 5.000000e-01 : f32
    %9 = vector.broadcast %cst_6 : f32 to vector<16x64xf32>
    %10 = arith.mulf %9, %8 : vector<16x64xf32>
    %cst_7 = arith.constant 0.707106769 : f32
    %11 = vector.broadcast %cst_7 : f32 to vector<16x64xf32>
    %12 = arith.mulf %8, %11 : vector<16x64xf32>
    %13 = math.erf %12 : vector<16x64xf32>
    %cst_8 = arith.constant 1.000000e+00 : f32
    %14 = vector.broadcast %cst_8 : f32 to vector<16x64xf32>
    %15 = arith.addf %14, %13 : vector<16x64xf32>
    %16 = arith.mulf %10, %15 : vector<16x64xf32>
    %c0_9 = arith.constant 0 : index
    %c0_10 = arith.constant 0 : index
    %17 = vector.load %arg8[%c0_9, %c0_10] : memref<16x128xf32, #tpu.memory_space<vmem>>, vector<16x128xf32>
    %18 = arith.truncf %16 : vector<16x64xf32> to vector<16x64xbf16>
    %c0_11 = arith.constant 0 : index
    %c0_12 = arith.constant 0 : index
    %19 = vector.load %arg5[%c0_11, %c0_12] : memref<64x128xbf16, #tpu.memory_space<vmem>>, vector<64x128xbf16>
    %cst_13 = arith.constant dense<0.000000e+00> : vector<16x128xf32>
    %20 = tpu.matmul %18, %19, %cst_13 {dimension_numbers = #tpu.dot_dimension_numbers<[1], [0], [0], [1], [0, 0, 1, 1], [], []>} : vector<16x64xbf16>, vector<64x128xbf16>, vector<16x128xf32> -> vector<16x128xf32>
    %21 = arith.addf %17, %20 : vector<16x128xf32>
    %c0_14 = arith.constant 0 : index
    %c0_15 = arith.constant 0 : index
    %22 = vector.load %arg8[%c0_14, %c0_15] : memref<16x128xf32, #tpu.memory_space<vmem>>, vector<16x128xf32>
    tpu.vector_store %arg8[%c0_14, %c0_15], %21 {strides = array<i32>} : memref<16x128xf32, #tpu.memory_space<vmem>>, vector<16x128xf32>,
    %c0_i32_16 = arith.constant 0 : i32
    %23 = arith.cmpi eq, %arg1, %c0_i32_16 : i32
    %24 = arith.extui %23 : i1 to i32
    %c0_i32_17 = arith.constant 0 : i32
    %25 = arith.cmpi ne, %24, %c0_i32_17 : i32
    scf.if %25 {
      %c0_18 = arith.constant 0 : index
      %c0_19 = arith.constant 0 : index
      %26 = vector.load %arg8[%c0_18, %c0_19] : memref<16x128xf32, #tpu.memory_space<vmem>>, vector<16x128xf32>
      %c0_20 = arith.constant 0 : index
      %c0_21 = arith.constant 0 : index
      %27 = vector.load %arg6[%c0_20, %c0_21] : memref<1x128xf32, #tpu.memory_space<vmem>>, vector<1x128xf32>
      %28 = vector.broadcast %27 : vector<1x128xf32> to vector<16x128xf32>
      %29 = arith.addf %26, %28 : vector<16x128xf32>
      %c0_22 = arith.constant 0 : index
      %c0_23 = arith.constant 0 : index
      %30 = vector.load %arg7[%c0_22, %c0_23] : memref<16x128xf32, #tpu.memory_space<vmem>>, vector<16x128xf32>
      tpu.vector_store %arg7[%c0_22, %c0_23], %29 {strides = array<i32>} : memref<16x128xf32, #tpu.memory_space<vmem>>, vector<16x128xf32>,
    } else {
    }
    return
  }
  func.func @transform_0(%arg0: i32, %arg1: i32) -> (i32, i32) {
    %c0_i32 = arith.constant 0 : i32
    %c0_i32_0 = arith.constant 0 : i32
    return %arg0, %c0_i32 : i32, i32
  }
  func.func @transform_1(%arg0: i32, %arg1: i32) -> (i32, i32) {
    %c0_i32 = arith.constant 0 : i32
    %c0_i32_0 = arith.constant 0 : i32
    return %c0_i32, %arg1 : i32, i32
  }
  func.func @transform_2(%arg0: i32, %arg1: i32) -> (i32, i32) {
    %c0_i32 = arith.constant 0 : i32
    %c0_i32_0 = arith.constant 0 : i32
    return %c0_i32, %arg1 : i32, i32
  }
  func.func @transform_3(%arg0: i32, %arg1: i32) -> (i32, i32) {
    %c0_i32 = arith.constant 0 : i32
    %c0_i32_0 = arith.constant 0 : i32
    return %arg1, %c0_i32 : i32, i32
  }
  func.func @transform_4(%arg0: i32, %arg1: i32) -> (i32, i32) {
    %c0_i32 = arith.constant 0 : i32
    %c0_i32_0 = arith.constant 0 : i32
    %c0_i32_1 = arith.constant 0 : i32
    return %c0_i32, %c0_i32_0 : i32, i32
  }
  func.func @transform_5(%arg0: i32, %arg1: i32) -> (i32, i32) {
    %c0_i32 = arith.constant 0 : i32
    %c0_i32_0 = arith.constant 0 : i32
    return %arg0, %c0_i32 : i32, i32
  }
}

</mosaic_0001>

<llo_original>
// kernel: tpu_custom_call.1
$region0: #{tpu_custom_call.1}
  #allocation0 [shape = 'u32[]', space=smem, size = 0x4, offset = 0x4, fixed_abs, tag = 'smem constant byte address 0x4 - core index']
  #allocation1 [shape = 'u32[144,128]{1,0:T(1,128)}', space=vmem, size = 0x12000, scoped, tag = 'internal scratch']
  #allocation2 [shape = 'f32[16,128]{1,0:T(8,128)}', space=vmem, size = 0x2000, scoped, tag = 'scratch operand']
  %s0 = inlined_call_operand.vmem [shape: bf16[16,128], index: 0, kind: input, shape index: {}]
  %s1 = inlined_call_operand.vmem [shape: bf16[128,64], index: 1, kind: input, shape index: {}]
  %s2 = inlined_call_operand.vmem [shape: f32[1,64], index: 2, kind: input, shape index: {}]
  %s3 = inlined_call_operand.vmem [shape: bf16[64,128], index: 3, kind: input, shape index: {}]
  %s4 = inlined_call_operand.vmem [shape: f32[1,128], index: 4, kind: input, shape index: {}]
  %s5 = inlined_call_operand.hbm [shape: f32[16,128], index: 5, kind: output, shape index: {}]
  %s6 = sld [smem:[#allocation0]]
  $region38: #{tpu_custom_call.1} parent=0
    _
  %s8 = ssub.s32 1, %s6
  %s9 = scalar_select 0, %s8, %s6
  $region1: #{tpu_custom_call.1} parent=0
    #allocation3 [shape = 'u8[8192]{0}', space=vmem, size = 0x2000, scoped, tag = 'output window, operand 0, single buffered']
    #allocation4 [shape = 's32[1]{0}', space=sflag, size = 0x4, scoped, tag = 'scoped memory for tpu_custom_call.1']
    %10 = vsyncpa [#allocation4], 0
    // Predicated region
    $region2: #{tpu_custom_call.1} parent=1 // pred_check
      _
    $region3: #{tpu_custom_call.1} parent=1 // pred_check_branch
      %12 = sbr.rel (0) target = $region5
    $region4: #{tpu_custom_call.1} parent=1 // pred_region
      _
    $region5: #{tpu_custom_call.1} parent=1 // pred_fallthru
      _
    // Predicated region
    $region6: #{tpu_custom_call.1} parent=1 // pred_check
      _
    $region7: #{tpu_custom_call.1} parent=1 // pred_check_branch
      %14 = sbr.rel (0) target = $region9
    $region8: #{tpu_custom_call.1} parent=1 // pred_region
      _
    $region9: #{tpu_custom_call.1} parent=1 // pred_fallthru
      _
    // Predicated region
    $region10: #{tpu_custom_call.1} parent=1 // pred_check
      _
    $region11: #{tpu_custom_call.1} parent=1 // pred_check_branch
      %16 = sbr.rel (0) target = $region13
    $region12: #{tpu_custom_call.1} parent=1 // pred_region
      _
    $region13: #{tpu_custom_call.1} parent=1 // pred_fallthru
      _
    // Predicated region
    $region14: #{tpu_custom_call.1} parent=1 // pred_check
      _
    $region15: #{tpu_custom_call.1} parent=1 // pred_check_branch
      %18 = sbr.rel (0) target = $region17
    $region16: #{tpu_custom_call.1} parent=1 // pred_region
      _
    $region17: #{tpu_custom_call.1} parent=1 // pred_fallthru
      _
    // Predicated region
    $region18: #{tpu_custom_call.1} parent=1 // pred_check
      _
    $region19: #{tpu_custom_call.1} parent=1 // pred_check_branch
      %20 = sbr.rel (0) target = $region21
    $region20: #{tpu_custom_call.1} parent=1 // pred_region
      _
    $region21: #{tpu_custom_call.1} parent=1 // pred_fallthru
      _
    %p22 = scmp.eq.s32.totalorder 0, 0
    // Predicated region
    $region22: #{tpu_custom_call.1} parent=1 // pred_check
      %p23 = pneg %p22
    $region23: #{tpu_custom_call.1} parent=1 // pred_check_branch
      %25 = sbr.rel (%p23) target = $region25
    $region24: #{tpu_custom_call.1} parent=1 // pred_region
      %26 = vst [vmem:[#allocation2] sm:$0xff] 0.0
      %27 = vst [vmem:[#allocation2 + $0x8] sm:$0xff] 0.0
    $region25: #{tpu_custom_call.1} parent=1 // pred_fallthru
      _
    %v28 = vld [vmem:[%s0] sm:$0xf]
    %v29 = vld [vmem:[%s0 + $0x4] sm:$0xf]
    %v30 = vld [vmem:[%s1] sm:$0xf]
    %v31 = vld [vmem:[%s1 + $0x4] sm:$0xf]
    %v32 = vld [vmem:[%s1 + $0x8] sm:$0xf]
    %v33 = vld [vmem:[%s1 + $0xc] sm:$0xf]
    %v34 = vld [vmem:[%s1 + $0x10] sm:$0xf]
    %v35 = vld [vmem:[%s1 + $0x14] sm:$0xf]
    %v36 = vld [vmem:[%s1 + $0x18] sm:$0xf]
    %v37 = vld [vmem:[%s1 + $0x1c] sm:$0xf]
    %v38 = vld [vmem:[%s1 + $0x20] sm:$0xf]
    %v39 = vld [vmem:[%s1 + $0x24] sm:$0xf]
    %v40 = vld [vmem:[%s1 + $0x28] sm:$0xf]
    %v41 = vld [vmem:[%s1 + $0x2c] sm:$0xf]
    %v42 = vld [vmem:[%s1 + $0x30] sm:$0xf]
    %v43 = vld [vmem:[%s1 + $0x34] sm:$0xf]
    %v44 = vld [vmem:[%s1 + $0x38] sm:$0xf]
    %v45 = vld [vmem:[%s1 + $0x3c] sm:$0xf]
    %v46 = vld [vmem:[%s2] sm:$0x1]
    %v48 = vlaneseq
    %v49 = vshrl.u32 %v48, 7
    %v50 = vsub.s32 0, %v49
    %v51 = vrot.slane %v46, %v50
    %v55 = vunpack.c.l.b16 %v28
    %v56 = vunpack.c.l.b16 %v29
    %v57 = vpack.c.b16 %v56, %v55
    %v75 = vunpack.c.l.b16 %v30
    %v76 = vunpack.c.l.b16 %v31
    %v77 = vunpack.c.l.b16 %v32
    %v78 = vunpack.c.l.b16 %v33
    %v79 = vunpack.c.l.b16 %v34
    %v80 = vunpack.c.l.b16 %v35
    %v81 = vunpack.c.l.b16 %v36
    %v82 = vunpack.c.l.b16 %v37
    %v83 = vunpack.c.l.b16 %v38
    %v84 = vunpack.c.l.b16 %v39
    %v85 = vunpack.c.l.b16 %v40
    %v86 = vunpack.c.l.b16 %v41
    %v87 = vunpack.c.l.b16 %v42
    %v88 = vunpack.c.l.b16 %v43
    %v89 = vunpack.c.l.b16 %v44
    %v90 = vunpack.c.l.b16 %v45
    %v91 = vpack.c.b16 %v76, %v75
    %v92 = vpack.c.b16 %v78, %v77
    %v93 = vpack.c.b16 %v80, %v79
    %v94 = vpack.c.b16 %v82, %v81
    %v95 = vpack.c.b16 %v84, %v83
    %v96 = vpack.c.b16 %v86, %v85
    %v97 = vpack.c.b16 %v88, %v87
    %v98 = vpack.c.b16 %v90, %v89
    %107 = vmatprep.subr.bf16.mxu0 0
    %108 = vmatpush1.bf16.msra.mxu0 %v98
    %109 = vmatprep.subr.bf16.mxu0 0
    %110 = vmatpush1.bf16.msra.mxu0 %v97
    %111 = vmatprep.subr.bf16.mxu0 0
    %112 = vmatpush1.bf16.msra.mxu0 %v96
    %113 = vmatprep.subr.bf16.mxu0 0
    %114 = vmatpush1.bf16.msra.mxu0 %v95
    %115 = vmatprep.subr.bf16.mxu0 0
    %116 = vmatpush1.bf16.msra.mxu0 %v94
    %117 = vmatprep.subr.bf16.mxu0 0
    %118 = vmatpush1.bf16.msra.mxu0 %v93
    %119 = vmatprep.subr.bf16.mxu0 0
    %120 = vmatpush1.bf16.msra.mxu0 %v92
    %121 = vmatprep.subr.bf16.mxu0 0
    %122 = vmatpush1.bf16.msra.mxu0 %v91
    %123 = vmatprep.subr.bf16.mxu0 0
    %124 = vmatpush2.bf16.msra.mxu0 0
    %125 = vmatprep.subr.bf16.mxu0 0
    %126 = vmatpush2.bf16.msra.mxu0 0
    %127 = vmatprep.subr.bf16.mxu0 0
    %128 = vmatpush2.bf16.msra.mxu0 0
    %129 = vmatprep.subr.bf16.mxu0 0
    %130 = vmatpush2.bf16.msra.mxu0 0
    %131 = vmatprep.subr.bf16.mxu0 0
    %132 = vmatpush2.bf16.msra.mxu0 0
    %133 = vmatprep.subr.bf16.mxu0 0
    %134 = vmatpush2.bf16.msra.mxu0 0
    %135 = vmatprep.subr.bf16.mxu0 0
    %136 = vmatpush2.bf16.msra.mxu0 0
    %137 = vmatprep.subr.bf16.mxu0 0
    %138 = vmatpush2.bf16.msra.mxu0 0
    %139 = vmatprep.mubr.bf16.mxu0 0
    %140 = vmatmul.mubr.bf16.gmra.mxu0 %v57
    %v141 = vpop.f32.mrf.mxu0
    %v142 = vadd.f32 %v51, %v141
    %v143 = vpop.f32.mrf.mxu0
    %v144 = vpop.f32.mrf.mxu0
    %v145 = vadd.f32 %v51, %v144
    %v146 = vpop.f32.mrf.mxu0
    %147 = vdwg.mxu0
    %v148 = vmul.f32 %v142, 0.5
    %v149 = vmul.f32 %v145, 0.5
    %v150 = vmul.f32 %v142, 0.70710677
    %v151 = vmul.f32 %v145, 0.70710677
    %v152 = verf.f32.pop %v150
    %v153 = verf.f32.pop %v151
    %v154 = vadd.f32 %v152, 1.0
    %v155 = vadd.f32 %v153, 1.0
    %v156 = vmul.f32 %v148, %v154
    %v157 = vmul.f32 %v149, %v155
    %v158 = vld [vmem:[#allocation2] sm:$0xff]
    %v159 = vld [vmem:[#allocation2 + $0x8] sm:$0xff]
    %v160 = vpack.c.bf16 %v157, %v156
    %v161 = vld [vmem:[%s3] sm:$0xf]
    %v162 = vld [vmem:[%s3 + $0x4] sm:$0xf]
    %v163 = vld [vmem:[%s3 + $0x8] sm:$0xf]
    %v164 = vld [vmem:[%s3 + $0xc] sm:$0xf]
    %v165 = vld [vmem:[%s3 + $0x10] sm:$0xf]
    %v166 = vld [vmem:[%s3 + $0x14] sm:$0xf]
    %v167 = vld [vmem:[%s3 + $0x18] sm:$0xf]
    %v168 = vld [vmem:[%s3 + $0x1c] sm:$0xf]
    %v177 = vunpack.c.l.b16 %v161
    %v178 = vunpack.c.l.b16 %v162
    %v179 = vunpack.c.l.b16 %v163
    %v180 = vunpack.c.l.b16 %v164
    %v181 = vunpack.c.l.b16 %v165
    %v182 = vunpack.c.l.b16 %v166
    %v183 = vunpack.c.l.b16 %v167
    %v184 = vunpack.c.l.b16 %v168
    %v185 = vpack.c.b16 %v178, %v177
    %v186 = vpack.c.b16 %v180, %v179
    %v187 = vpack.c.b16 %v182, %v181
    %v188 = vpack.c.b16 %v184, %v183
    %vm193 = vcmask 523264
    %v195 = vsel %vm193, %v160, 0
    %197 = vmatprep.subr.bf16.mxu0 0
    %198 = vmatpush1.bf16.msra.mxu0 0
    %199 = vmatprep.subr.bf16.mxu0 0
    %200 = vmatpush1.bf16.msra.mxu0 0
    %201 = vmatprep.subr.bf16.mxu0 0
    %202 = vmatpush1.bf16.msra.mxu0 0
    %203 = vmatprep.subr.bf16.mxu0 0
    %204 = vmatpush1.bf16.msra.mxu0 0
    %205 = vmatprep.subr.bf16.mxu0 0
    %206 = vmatpush1.bf16.msra.mxu0 %v188
    %207 = vmatprep.subr.bf16.mxu0 0
    %208 = vmatpush1.bf16.msra.mxu0 %v187
    %209 = vmatprep.subr.bf16.mxu0 0
    %210 = vmatpush1.bf16.msra.mxu0 %v186
    %211 = vmatprep.subr.bf16.mxu0 0
    %212 = vmatpush1.bf16.msra.mxu0 %v185
    %213 = vmatprep.subr.bf16.mxu0 0
    %214 = vmatpush2.bf16.msra.mxu0 0
    %215 = vmatprep.subr.bf16.mxu0 0
    %216 = vmatpush2.bf16.msra.mxu0 0
    %217 = vmatprep.subr.bf16.mxu0 0
    %218 = vmatpush2.bf16.msra.mxu0 0
    %219 = vmatprep.subr.bf16.mxu0 0
    %220 = vmatpush2.bf16.msra.mxu0 0
    %221 = vmatprep.subr.bf16.mxu0 0
    %222 = vmatpush2.bf16.msra.mxu0 0
    %223 = vmatprep.subr.bf16.mxu0 0
    %224 = vmatpush2.bf16.msra.mxu0 0
    %225 = vmatprep.subr.bf16.mxu0 0
    %226 = vmatpush2.bf16.msra.mxu0 0
    %227 = vmatprep.subr.bf16.mxu0 0
    %228 = vmatpush2.bf16.msra.mxu0 0
    %229 = vmatprep.mubr.bf16.mxu0 0
    %230 = vmatmul.mubr.bf16.gmra.mxu0 %v195
    %v231 = vpop.f32.mrf.mxu0
    %v232 = vadd.f32 0.0, %v231
    %v233 = vpop.f32.mrf.mxu0
    %v234 = vpop.f32.mrf.mxu0
    %v235 = vadd.f32 0.0, %v234
    %v236 = vpop.f32.mrf.mxu0
    %237 = vdwg.mxu0
    %v238 = vadd.f32 %v158, %v232
    %v239 = vadd.f32 %v159, %v235
    %240 = vst [vmem:[#allocation2] sm:$0xff] %v238
    %241 = vst [vmem:[#allocation2 + $0x8] sm:$0xff] %v239
    // Predicated region
    $region26: #{tpu_custom_call.1} parent=1 // pred_check
      %p242 = pneg %p22
    $region27: #{tpu_custom_call.1} parent=1 // pred_check_branch
      %244 = sbr.rel (%p242) target = $region29
    $region28: #{tpu_custom_call.1} parent=1 // pred_region
      %v245 = vld [vmem:[#allocation2] sm:$0xff]
      %v246 = vld [vmem:[#allocation2 + $0x8] sm:$0xff]
      %v247 = vld [vmem:[%s4] sm:$0x1]
      %v249 = vlaneseq
      %v250 = vshrl.u32 %v249, 7
      %v251 = vsub.s32 0, %v250
      %v252 = vrot.slane %v247, %v251
      %v254 = vadd.f32 %v245, %v252
      %v255 = vadd.f32 %v246, %v252
      %256 = vst [vmem:[#allocation3] sm:$0xff] %v254
      %257 = vst [vmem:[#allocation3 + $0x8] sm:$0xff] %v255
    $region29: #{tpu_custom_call.1} parent=1 // pred_fallthru
      _
    // Predicated region
    $region30: #{tpu_custom_call.1} parent=1 // pred_check
      _
    $region31: #{tpu_custom_call.1} parent=1 // pred_check_branch
      %259 = sbr.rel (0) target = $region33
    $region32: #{tpu_custom_call.1} parent=1 // pred_region
      %s261 = ssub.s32 256, 256
      %262 = vsyncadd [#allocation4], %s261
      %s263 = sshll.u32 [#allocation3], 4
      %s264 = int_to_ptr.vmem [resolvable:$true] %s263
      %269 = dma.vmem_to_hbm [thread:$0]  %s264, 256, %s5, [#allocation4], 128, 128, 8
    $region33: #{tpu_custom_call.1} parent=1 // pred_fallthru
      _
    // Predicated region
    $region34: #{tpu_custom_call.1} parent=1 // pred_check
      _
    $region35: #{tpu_custom_call.1} parent=1 // pred_check_branch
      %271 = sbr.rel (0) target = $region37
    $region36: #{tpu_custom_call.1} parent=1 // pred_region
      %272 = dma.done [#allocation4], 256
    $region37: #{tpu_custom_call.1} parent=1 // pred_fallthru
      _
    %273 = vsyncpa [#allocation4], 1

</llo_original>
